<compile_context>
chip_gen: v6e
topology: v6e:2x2x1
jax: 0.10.0
libtpu: 0.0.40
codegen_flags: <defaults>
</compile_context>

<pallas_src>
import jax
import jax.numpy as jnp
from jax import lax
from jax.experimental import pallas as pl
from jax.experimental.pallas import tpu as pltpu

LANE = 128      # TPU lane width (fast axis)
SUBLANE = 8     # f32 sublane granularity

# Contract dim 1 of both operands: A @ B^T on the MXU, result (A_rows, B_rows).
_TRANS_B = (((1,), (1,)), ((), ()))


def _round_up(v, m):
    return ((v + m - 1) // m) * m


# ---------------------------------------------------------------------------
# Kernels.  Both produce the TRANSPOSED output tile (n_out, tb): batch on the
# lane axis -> lane-dense stores, HBM writeback is exactly the true output.
# ---------------------------------------------------------------------------
def _collapsed_kernel(x_ref, wct_ref, bct_ref, out_ref):
    # x_ref: (tb, In)  wct_ref: (8, In) [rows >= n_out are zero]
    # bct_ref: (n_out, 1)  out_ref: (n_out, tb)
    w = wct_ref[...]
    x = x_ref[...].astype(w.dtype)
    out_t = lax.dot_general(w, x, _TRANS_B, preferred_element_type=jnp.float32)
    n_out = out_ref.shape[0]
    out_ref[...] = (out_t[:n_out, :] + bct_ref[...]).astype(out_ref.dtype)


def _fused_kernel(x_ref, w1_ref, b1_ref, w2t_ref, b2t_ref, out_ref):
    # x_ref: (tb, In)  w1_ref: (In, H)  b1_ref: (1, H)
    # w2t_ref: (8, H) [rows >= n_out are zero]  b2t_ref: (n_out, 1)
    # out_ref: (n_out, tb)
    w1 = w1_ref[...]
    x = x_ref[...].astype(w1.dtype)
    hidden = jnp.dot(x, w1, preferred_element_type=jnp.float32)
    hidden = hidden + b1_ref[...]                      # f32 bias add (VPU, v5e-safe)
    w2t = w2t_ref[...]
    out_t = lax.dot_general(w2t, hidden.astype(w2t.dtype), _TRANS_B,
                            preferred_element_type=jnp.float32)
    n_out = out_ref.shape[0]
    out_ref[...] = (out_t[:n_out, :] + b2t_ref[...]).astype(out_ref.dtype)


# ---------------------------------------------------------------------------
# Wrapper helpers.
# ---------------------------------------------------------------------------
def _vmem_budget_bytes():
    """Generation-aware VMEM budget with headroom for compiler scratch."""
    try:
        cap = pltpu.get_tpu_info().vmem_capacity_bytes
    except Exception:
        cap = 64 << 20                      # conservative: assume v7x-class 64 MiB
    # v7x (64 MiB) -> ~52 MiB; v5e/v6e (128 MiB) -> ~108 MiB.
    return int(max(min(cap - (12 << 20), int(cap * 0.85)), 16 << 20))


def _pick_batch_tile(B, per_row_bytes, resident_bytes, vmem_budget, block_b):
    if B <= LANE:
        return B                            # single full-batch block
    avail = vmem_budget - resident_bytes - (6 << 20)   # slack for internal scratch
    tb_cap = max(avail // max(per_row_bytes, 1), LANE)
    tb = max((min(block_b, tb_cap) // LANE) * LANE, LANE)
    if B <= tb:
        # Keep >= 2 grid steps so ("parallel",) can shard the batch across
        # v7x's two TensorCores instead of one mega-tile on a single core.
        tb = max(_round_up(pl.cdiv(B, 2), LANE), LANE)
    return tb


def prepare_params(w1, b1, w2, b2, *, collapse=True, compute_dtype=None):
    """One-time weight prep, hoisted out of the per-call path.

    w1: (In, H), b1: (H,)|(1,H), w2: (H, n_out), b2: (n_out,)|(1,n_out)
    (weights stored pre-transposed w.r.t. torch.nn.Linear: [in, out]).
    collapse=True folds the activation-free linears: out = x@(W1@W2) + (b1@W2+b2).
    compute_dtype: optional bf16 cast of matmul weights (biases/accumulate stay f32).
    """
    w1 = w1.astype(jnp.float32)
    w2 = w2.astype(jnp.float32)
    b1 = jnp.reshape(b1, (1, -1)).astype(jnp.float32)
    b2 = jnp.reshape(b2, (1, -1)).astype(jnp.float32)
    n_out = w2.shape[-1]
    rows = _round_up(n_out, SUBLANE)        # sublane-pad the tiny final-matmul lhs

    if collapse:
        wc = jnp.dot(w1, w2, preferred_element_type=jnp.float32)        # (In, n_out)
        bc = jnp.dot(b1, w2, preferred_element_type=jnp.float32) + b2   # (1, n_out)
        wct = jnp.zeros((rows, w1.shape[0]), jnp.float32).at[:n_out].set(wc.T)
        bct = bc.T                                                       # (n_out, 1)
        if compute_dtype is not None:
            wct = wct.astype(compute_dtype)
        return ("collapsed", n_out, (wct, bct))

    w2t = jnp.zeros((rows, w2.shape[0]), jnp.float32).at[:n_out].set(w2.T)  # (rows, H)
    b2t = b2.T                                                              # (n_out, 1)
    if compute_dtype is not None:
        w1 = w1.astype(compute_dtype)
        w2t = w2t.astype(compute_dtype)
    return ("fused", n_out, (w1, b1, w2t, b2t))


def feedforward(x, params, *, block_b=1024):
    """x: (B, In) -> (B, n_out) f32 = fc2(fc1(x)), one fused Pallas call."""
    kind, n_out, ws = params
    B, In = x.shape
    xb = x.dtype.itemsize
    vmem_budget = _vmem_budget_bytes()

    if kind == "collapsed":
        wct, bct = ws
        kernel = _collapsed_kernel
        # per batch row: double-buffered x row + double-buffered out column
        per_row = 2 * In * xb + 2 * n_out * 4 + 64
        # conservative: constant-index weight blocks may be double-buffered
        resident = 2 * sum(int(a.size) * a.dtype.itemsize for a in ws)
        weight_specs = [pl.BlockSpec(wct.shape, lambda i: (0, 0)),
                        pl.BlockSpec(bct.shape, lambda i: (0, 0))]
    else:
        w1, b1, w2t, b2t = ws
        H = w1.shape[1]
        kernel = _fused_kernel
        # x + out (double-buffered) + (tb, H) f32 hidden temp
        per_row = 2 * In * xb + 2 * n_out * 4 + H * 4 + 64
        resident = 2 * sum(int(a.size) * a.dtype.itemsize for a in ws)
        # TODO(synk): add an H/K reduction grid axis with an f32 VMEM accumulator
        # once In*H*itemsize exceeds ~half the usable VMEM (~24 MiB v7x,
        # ~48 MiB v6e/v5e) instead of keeping W1 fully resident.
        weight_specs = [pl.BlockSpec(w1.shape, lambda i: (0, 0)),
                        pl.BlockSpec(b1.shape, lambda i: (0, 0)),
                        pl.BlockSpec(w2t.shape, lambda i: (0, 0)),
                        pl.BlockSpec(b2t.shape, lambda i: (0, 0))]

    tb = _pick_batch_tile(B, per_row, resident, vmem_budget, block_b)
    grid = (pl.cdiv(B, tb),)    # last tile may be ragged; boundary DMAs are clamped

    out_t = pl.pallas_call(
        kernel,
        out_shape=jax.ShapeDtypeStruct((n_out, B), jnp.float32),
        grid_spec=pltpu.PrefetchScalarGridSpec(
            num_scalar_prefetch=0,
            grid=grid,
            in_specs=[pl.BlockSpec((tb, In), lambda i: (i, 0))] + weight_specs,
            out_specs=pl.BlockSpec((n_out, tb), lambda i: (0, i)),
        ),
        compiler_params=pltpu.CompilerParams(
            dimension_semantics=("parallel",),
            vmem_limit_bytes=int(vmem_budget),
        ),
    )(x, *ws)

    return out_t.T              # (B, n_out); touches only n_out*B*4 bytes


def init_params(key, input_size, hidden_size):
    """Deterministic init mirroring torch.nn.Linear's U(-1/sqrt(fan_in), ...)."""
    k1, k2, k3, k4 = jax.random.split(key, 4)
    bound1 = 1.0 / jnp.sqrt(input_size)
    bound2 = 1.0 / jnp.sqrt(hidden_size)
    # Stored pre-transposed: [in_features, out_features]
    w1 = jax.random.uniform(k1, (input_size, hidden_size), jnp.float32,
                            -bound1, bound1)
    b1 = jax.random.uniform(k2, (1, hidden_size), jnp.float32, -bound1, bound1)
    w2 = jax.random.uniform(k3, (hidden_size, 2), jnp.float32, -bound2, bound2)
    b2 = jax.random.uniform(k4, (1, 2), jnp.float32, -bound2, bound2)
    return w1, b1, w2, b2


if __name__ == "__main__":
    key = jax.random.PRNGKey(0)

    # --- small demo shapes matching the module's spec ------------------------
    batch, input_size, hidden_size = 8, 16, 32
    kx, kp = jax.random.split(key)
    x = jax.random.normal(kx, (batch, input_size), jnp.float32)
    w1, b1, w2, b2 = init_params(kp, input_size, hidden_size)
    ref = (x @ w1 + b1) @ w2 + b2

    out = jax.block_until_ready(
        feedforward(x, prepare_params(w1, b1, w2, b2, collapse=True)))
    assert out.shape == (batch, 2)
    assert jnp.allclose(out, ref, atol=1e-3, rtol=1e-3)

    out_f = jax.block_until_ready(
        feedforward(x, prepare_params(w1, b1, w2, b2, collapse=False)))
    assert out_f.shape == (batch, 2)
    assert jnp.allclose(out_f, ref, atol=1e-3, rtol=1e-3)

    # --- larger check: multi-step batch grid + ragged last tile --------------
    batch2, input_size2, hidden_size2 = 300, 64, 128
    kx2, kp2 = jax.random.split(kp)
    x2 = jax.random.normal(kx2, (batch2, input_size2), jnp.float32)
    w1b, b1b, w2b, b2b = init_params(kp2, input_size2, hidden_size2)
    ref2 = (x2 @ w1b + b1b) @ w2b + b2b

    out2 = jax.block_until_ready(
        feedforward(x2, prepare_params(w1b, b1b, w2b, b2b, collapse=True)))
    assert out2.shape == (batch2, 2)
    assert jnp.allclose(out2, ref2, atol=1e-3, rtol=1e-3)

    out2f = jax.block_until_ready(
        feedforward(x2, prepare_params(w1b, b1b, w2b, b2b, collapse=False)))
    assert out2f.shape == (batch2, 2)
    assert jnp.allclose(out2f, ref2, atol=1e-3, rtol=1e-3)

    print("KERNEL_OK")
</pallas_src>

<mosaic_0001>
module attributes {stable_mosaic.version = 11 : i64} {
  func.func @_collapsed_kernel(%arg0: i32, %arg1: memref<8x16xf32, #tpu.memory_space<vmem>>, %arg2: memref<8x16xf32, #tpu.memory_space<vmem>>, %arg3: memref<2x1xf32, #tpu.memory_space<vmem>>, %arg4: memref<2x8xf32, #tpu.memory_space<vmem>>) attributes {dimension_semantics = [#tpu.dimension_semantics<parallel>], iteration_bounds = array<i64: 1>, scalar_prefetch = 0 : i64, scratch_operands = 0 : i64, tpu.core_type = #tpu.core_type<tc>, window_params = [{transform_indices = @transform_0, window_bounds = array<i64: 8, 16>}, {pipeline_mode = #tpu.pipeline_mode<synchronous>, transform_indices = @transform_1, window_bounds = array<i64: 8, 16>}, {pipeline_mode = #tpu.pipeline_mode<synchronous>, transform_indices = @transform_2, window_bounds = array<i64: 2, 1>}, {transform_indices = @transform_3, window_bounds = array<i64: 2, 8>}]} {
    %c0 = arith.constant 0 : index
    %c0_0 = arith.constant 0 : index
    %0 = vector.load %arg2[%c0, %c0_0] : memref<8x16xf32, #tpu.memory_space<vmem>>, vector<8x16xf32>
    %c0_1 = arith.constant 0 : index
    %c0_2 = arith.constant 0 : index
    %1 = vector.load %arg1[%c0_1, %c0_2] : memref<8x16xf32, #tpu.memory_space<vmem>>, vector<8x16xf32>
    %cst = arith.constant dense<0.000000e+00> : vector<8x8xf32>
    %2 = tpu.matmul %0, %1, %cst {dimension_numbers = #tpu.dot_dimension_numbers<[1], [1], [0], [0], [0, 0, 1, 0], [], []>} : vector<8x16xf32>, vector<8x16xf32>, vector<8x8xf32> -> vector<8x8xf32>
    %3 = vector.extract_strided_slice %2 {offsets = [0, 0], sizes = [2, 8], strides = [1, 1]} : vector<8x8xf32> to vector<2x8xf32>
    %c0_3 = arith.constant 0 : index
    %c0_4 = arith.constant 0 : index
    %4 = vector.load %arg3[%c0_3, %c0_4] : memref<2x1xf32, #tpu.memory_space<vmem>>, vector<2x1xf32>
    %5 = vector.broadcast %4 : vector<2x1xf32> to vector<2x8xf32>
    %6 = arith.addf %3, %5 : vector<2x8xf32>
    %c0_5 = arith.constant 0 : index
    %c0_6 = arith.constant 0 : index
    %7 = vector.load %arg4[%c0_5, %c0_6] : memref<2x8xf32, #tpu.memory_space<vmem>>, vector<2x8xf32>
    tpu.vector_store %arg4[%c0_5, %c0_6], %6 {strides = array<i32>} : memref<2x8xf32, #tpu.memory_space<vmem>>, vector<2x8xf32>,
    return
  }
  func.func @transform_0(%arg0: i32) -> (i32, i32) {
    %c0_i32 = arith.constant 0 : i32
    %c0_i32_0 = arith.constant 0 : i32
    return %arg0, %c0_i32 : i32, i32
  }
  func.func @transform_1(%arg0: i32) -> (i32, i32) {
    %c0_i32 = arith.constant 0 : i32
    %c0_i32_0 = arith.constant 0 : i32
    %c0_i32_1 = arith.constant 0 : i32
    return %c0_i32, %c0_i32_0 : i32, i32
  }
  func.func @transform_2(%arg0: i32) -> (i32, i32) {
    %c0_i32 = arith.constant 0 : i32
    %c0_i32_0 = arith.constant 0 : i32
    %c0_i32_1 = arith.constant 0 : i32
    return %c0_i32, %c0_i32_0 : i32, i32
  }
  func.func @transform_3(%arg0: i32) -> (i32, i32) {
    %c0_i32 = arith.constant 0 : i32
    %c0_i32_0 = arith.constant 0 : i32
    return %c0_i32, %arg0 : i32, i32
  }
}

</mosaic_0001>

<llo_original>
// kernel: tpu_custom_call.1
$region0: #{tpu_custom_call.1}
  #allocation0 [shape = 'u32[]', space=smem, size = 0x4, offset = 0x4, fixed_abs, tag = 'smem constant byte address 0x4 - core index']
  #allocation1 [shape = 'u32[144,128]{1,0:T(1,128)}', space=vmem, size = 0x12000, scoped, tag = 'internal scratch']
  %s0 = inlined_call_operand.hbm [shape: f32[8,16], index: 0, kind: input, shape index: {}]
  %s1 = inlined_call_operand.hbm [shape: f32[8,16], index: 1, kind: input, shape index: {}]
  %s2 = inlined_call_operand.vmem [shape: f32[2,1], index: 2, kind: input, shape index: {}]
  %s3 = inlined_call_operand.hbm [shape: f32[2,8], index: 3, kind: output, shape index: {}]
  %s4 = sld [smem:[#allocation0]]
  $region30: #{tpu_custom_call.1} parent=0
    _
  %s6 = ssub.s32 1, %s4
  %s7 = scalar_select 0, %s6, %s4
  $region1: #{tpu_custom_call.1} parent=0
    #allocation2 [shape = 'u8[4096]{0}', space=vmem, size = 0x1000, scoped, tag = 'input window, operand 0, single buffered']
    #allocation3 [shape = 's32[1]{0}', space=sflag, size = 0x4, scoped, tag = 'scoped memory for tpu_custom_call.1']
    #allocation4 [shape = 's32[1]{0}', space=sflag, size = 0x4, scoped, tag = 'scoped memory for tpu_custom_call.1']
    #allocation5 [shape = 'u8[4096]{0}', space=vmem, size = 0x1000, scoped, tag = 'input window, operand 1, single buffered']
    #allocation6 [shape = 's32[1]{0}', space=sflag, size = 0x4, scoped, tag = 'scoped memory for tpu_custom_call.1']
    #allocation7 [shape = 'u8[1024]{0}', space=vmem, size = 0x400, scoped, tag = 'output window, operand 0, single buffered']
    %8 = vsyncpa [#allocation3], 0
    %9 = vsyncpa [#allocation6], 0
    %10 = vsyncpa [#allocation4], 0
    // Predicated region
    $region2: #{tpu_custom_call.1} parent=1 // pred_check
      _
    $region3: #{tpu_custom_call.1} parent=1 // pred_check_branch
      %12 = sbr.rel (0) target = $region5
    $region4: #{tpu_custom_call.1} parent=1 // pred_region
      %s14 = ssub.s32 128, 128
      %15 = vsyncadd [#allocation3], %s14
      %s17 = sshll.u32 [#allocation2], 4
      %s18 = int_to_ptr.vmem [resolvable:$true] %s17
      %20 = dma.hbm_to_vmem [thread:$0]  %s0, 128, %s18, [#allocation3]
    $region5: #{tpu_custom_call.1} parent=1 // pred_fallthru
      _
    // Predicated region
    $region6: #{tpu_custom_call.1} parent=1 // pred_check
      _
    $region7: #{tpu_custom_call.1} parent=1 // pred_check_branch
      %22 = sbr.rel (0) target = $region9
    $region8: #{tpu_custom_call.1} parent=1 // pred_region
      %s24 = ssub.s32 128, 128
      %25 = vsyncadd [#allocation6], %s24
      %s27 = sshll.u32 [#allocation5], 4
      %s28 = int_to_ptr.vmem [resolvable:$true] %s27
      %30 = dma.hbm_to_vmem [thread:$0]  %s1, 128, %s28, [#allocation6]
    $region9: #{tpu_custom_call.1} parent=1 // pred_fallthru
      _
    // Predicated region
    $region10: #{tpu_custom_call.1} parent=1 // pred_check
      _
    $region11: #{tpu_custom_call.1} parent=1 // pred_check_branch
      %32 = sbr.rel (0) target = $region13
    $region12: #{tpu_custom_call.1} parent=1 // pred_region
      _
    $region13: #{tpu_custom_call.1} parent=1 // pred_fallthru
      _
    // Predicated region
    $region14: #{tpu_custom_call.1} parent=1 // pred_check
      _
    $region15: #{tpu_custom_call.1} parent=1 // pred_check_branch
      %34 = sbr.rel (0) target = $region17
    $region16: #{tpu_custom_call.1} parent=1 // pred_region
      %35 = dma.done [#allocation3], 128
    $region17: #{tpu_custom_call.1} parent=1 // pred_fallthru
      _
    // Predicated region
    $region18: #{tpu_custom_call.1} parent=1 // pred_check
      _
    $region19: #{tpu_custom_call.1} parent=1 // pred_check_branch
      %37 = sbr.rel (0) target = $region21
    $region20: #{tpu_custom_call.1} parent=1 // pred_region
      %38 = dma.done [#allocation6], 128
    $region21: #{tpu_custom_call.1} parent=1 // pred_fallthru
      _
    %v39 = vld [vmem:[#allocation5] sm:$0xff]
    %v40 = vld [vmem:[#allocation2] sm:$0xff]
    %vm41 = vcmask 130048
    %v43 = vsel %vm41, %v39, 0
    %v46 = vsel %vm41, %v40, 0
    %48 = vmatprep.subr.mxu0 0.0
    %49 = vmatpush1.xpose.msra.mxu0 0.0
    %50 = vmatprep.subr.mxu0 0.0
    %51 = vmatpush1.xpose.msra.mxu0 0.0
    %52 = vmatprep.subr.mxu0 0.0
    %53 = vmatpush1.xpose.msra.mxu0 0.0
    %54 = vmatprep.subr.mxu0 0.0
    %55 = vmatpush1.xpose.msra.mxu0 0.0
    %56 = vmatprep.subr.mxu0 0.0
    %57 = vmatpush1.xpose.msra.mxu0 0.0
    %58 = vmatprep.subr.mxu0 0.0
    %59 = vmatpush1.xpose.msra.mxu0 0.0
    %60 = vmatprep.subr.mxu0 0.0
    %61 = vmatpush1.xpose.msra.mxu0 0.0
    %62 = vmatprep.subr.mxu0 0.0
    %63 = vmatpush1.xpose.msra.mxu0 0.0
    %64 = vmatprep.subr.mxu0 0.0
    %65 = vmatpush1.xpose.msra.mxu0 0.0
    %66 = vmatprep.subr.mxu0 0.0
    %67 = vmatpush1.xpose.msra.mxu0 0.0
    %68 = vmatprep.subr.mxu0 0.0
    %69 = vmatpush1.xpose.msra.mxu0 0.0
    %70 = vmatprep.subr.mxu0 0.0
    %71 = vmatpush1.xpose.msra.mxu0 0.0
    %72 = vmatprep.subr.mxu0 0.0
    %73 = vmatpush1.xpose.msra.mxu0 0.0
    %74 = vmatprep.subr.mxu0 0.0
    %75 = vmatpush1.xpose.msra.mxu0 0.0
    %76 = vmatprep.subr.mxu0 0.0
    %77 = vmatpush1.xpose.msra.mxu0 0.0
    %78 = vmatprep.subr.mxu0 0.0
    %79 = vmatpush1.xpose.msra.mxu0 %v46
    %80 = vmatprep.subr.mxu0 0.0
    %81 = vmatpush2.xpose.msra.mxu0 0.0
    %82 = vmatprep.subr.mxu0 0.0
    %83 = vmatpush2.xpose.msra.mxu0 0.0
    %84 = vmatprep.subr.mxu0 0.0
    %85 = vmatpush2.xpose.msra.mxu0 0.0
    %86 = vmatprep.subr.mxu0 0.0
    %87 = vmatpush2.xpose.msra.mxu0 0.0
    %88 = vmatprep.subr.mxu0 0.0
    %89 = vmatpush2.xpose.msra.mxu0 0.0
    %90 = vmatprep.subr.mxu0 0.0
    %91 = vmatpush2.xpose.msra.mxu0 0.0
    %92 = vmatprep.subr.mxu0 0.0
    %93 = vmatpush2.xpose.msra.mxu0 0.0
    %94 = vmatprep.subr.mxu0 0.0
    %95 = vmatpush2.xpose.msra.mxu0 0.0
    %96 = vmatprep.subr.mxu0 0.0
    %97 = vmatpush2.xpose.msra.mxu0 0.0
    %98 = vmatprep.subr.mxu0 0.0
    %99 = vmatpush2.xpose.msra.mxu0 0.0
    %100 = vmatprep.subr.mxu0 0.0
    %101 = vmatpush2.xpose.msra.mxu0 0.0
    %102 = vmatprep.subr.mxu0 0.0
    %103 = vmatpush2.xpose.msra.mxu0 0.0
    %104 = vmatprep.subr.mxu0 0.0
    %105 = vmatpush2.xpose.msra.mxu0 0.0
    %106 = vmatprep.subr.mxu0 0.0
    %107 = vmatpush2.xpose.msra.mxu0 0.0
    %108 = vmatprep.subr.mxu0 0.0
    %109 = vmatpush2.xpose.msra.mxu0 0.0
    %110 = vmatprep.subr.mxu0 0.0
    %111 = vmatpush2.xpose.msra.mxu0 0.0
    %112 = vmatprep.mubr.f32.mxu0 0.0
    %113 = vmatmul.mubr.f32.gmra.mxu0 %v43
    %v114 = vpop.f32.mrf.mxu0
    %v115 = vadd.f32 0.0, %v114
    %v116 = vpop.f32.mrf.mxu0
    %117 = vdwg.mxu0
    %v118 = vld [vmem:[%s2] sm:$0x3]
    %120 = vset.pattern.permute.xlu0 0
    %121 = vperm.xlu0 %120, %v118
    %v122 = vpop.permute.xlu0 %121
    %v124 = vadd.f32 %v115, %v122
    %vm125 = vcmask 58368
    %126 = vst.msk [vmem:[#allocation7] sm:$0x3] %vm125, %v124
    // Predicated region
    $region22: #{tpu_custom_call.1} parent=1 // pred_check
      _
    $region23: #{tpu_custom_call.1} parent=1 // pred_check_branch
      %128 = sbr.rel (0) target = $region25
    $region24: #{tpu_custom_call.1} parent=1 // pred_region
      %s130 = ssub.s32 32, 32
      %131 = vsyncadd [#allocation4], %s130
      %s133 = sshll.u32 [#allocation7], 4
      %s134 = int_to_ptr.vmem [resolvable:$true] %s133
      %136 = dma.vmem_to_hbm [thread:$0]  %s134, 32, %s3, [#allocation4]
    $region25: #{tpu_custom_call.1} parent=1 // pred_fallthru
      _
    // Predicated region
    $region26: #{tpu_custom_call.1} parent=1 // pred_check
      _
    $region27: #{tpu_custom_call.1} parent=1 // pred_check_branch
      %138 = sbr.rel (0) target = $region29
    $region28: #{tpu_custom_call.1} parent=1 // pred_region
      %139 = dma.done [#allocation4], 32
    $region29: #{tpu_custom_call.1} parent=1 // pred_fallthru
      _
    %140 = vsyncpa [#allocation3], 1
    %141 = vsyncpa [#allocation6], 1
    %142 = vsyncpa [#allocation4], 1

</llo_original>
